<compile_context>
chip_gen: v7x
topology: tpu7x:2x2x1
jax: 0.10.0
libtpu: 0.0.40
codegen_flags: <defaults>
</compile_context>

<pallas_src>
import jax
import jax.numpy as jnp
import numpy as np
from jax.experimental import pallas as pl
from jax.experimental.pallas import tpu as pltpu


def _s2v_kernel(x_ref, m_ref, out_ref, acc_ref, cnt_ref):
    # x_ref : (TB, TT, D) VMEM (native dtype)
    # m_ref : (TB, TT, 1) VMEM (float32)
    # out_ref: (TB, D)    VMEM
    # acc_ref: (TB, D) f32 scratch, cnt_ref: (TB, 1) f32 scratch
    t = pl.program_id(1)

    @pl.when(t == 0)
    def _init():
        acc_ref[...] = jnp.zeros_like(acc_ref)
        cnt_ref[...] = jnp.zeros_like(cnt_ref)

    x = x_ref[...].astype(jnp.float32)          # per-tile up-cast (free on VPU)
    m = m_ref[...].astype(jnp.float32)          # (TB, TT, 1)

    acc_ref[...] += jnp.sum(x * m, axis=1)      # (TB, D) masked partial sum
    cnt_ref[...] += jnp.sum(m, axis=1)          # (TB, 1) token count

    @pl.when(t == pl.num_programs(1) - 1)
    def _finalize():
        counts = jnp.maximum(cnt_ref[...], 1.0)  # avoid divide-by-zero
        # exact divide: counts are small ints, approx rcp (~1e-3) would hurt
        out_ref[...] = (acc_ref[...] / counts).astype(out_ref.dtype)


def _pick_token_tile(T, D, itemsize, t_tile=None):
    """Pick a T tile that divides T, respects the (8,128) rule and caps the
    per-input tile at ~4 MiB (safe for v7x's smaller VMEM, fine on v5e/v6e)."""
    if t_tile is not None:
        assert T % t_tile == 0 and (t_tile % 8 == 0 or t_tile == T)
        return t_tile
    tt = T
    for cand in (1024, 512, 256, 128, 64, 32, 16, 8):
        if T % cand == 0:
            tt = cand
            break
    max_tile_bytes = 4 * 1024 * 1024
    while tt > 8 and tt % 2 == 0 and (8 * tt * D * itemsize) > max_tile_bytes:
        tt //= 2
    return tt


def sequence_to_vector(vector_sequence: jax.Array,
                       sequence_mask: jax.Array,
                       training: bool = False,
                       t_tile: int | None = None):
    """Pallas implementation of the SequenceToVector forward pass.

    Returns a dict with:
      combined_vector       : (B, D)   (same dtype as the input)
      layer_representations : (B, 1, D)   (num_layers == 1)
    """
    del training  # no dropout in this encoder
    B, T, D = vector_sequence.shape

    # mask kept as (B, T, 1) float32: T lands on sublanes, broadcast over D is
    # a cheap per-lane splat (no XLU relayout).
    mask3 = sequence_mask.astype(jnp.float32).reshape(B, T, 1)

    itemsize = np.dtype(vector_sequence.dtype).itemsize
    TB = 8 if (B % 8 == 0) else B           # out block 2nd-minor dim: x8 or full
    TT = _pick_token_tile(T, D, itemsize, t_tile)
    grid = (B // TB, T // TT)

    out_dtype = vector_sequence.dtype

    combined = pl.pallas_call(
        _s2v_kernel,
        out_shape=jax.ShapeDtypeStruct((B, D), out_dtype),
        grid_spec=pltpu.PrefetchScalarGridSpec(
            num_scalar_prefetch=0,
            grid=grid,
            in_specs=[
                pl.BlockSpec((TB, TT, D), lambda b, t: (b, t, 0)),
                pl.BlockSpec((TB, TT, 1), lambda b, t: (b, t, 0)),
            ],
            out_specs=pl.BlockSpec((TB, D), lambda b, t: (b, 0)),
            scratch_shapes=[
                pltpu.VMEM((TB, D), jnp.float32),   # masked-sum accumulator
                pltpu.VMEM((TB, 1), jnp.float32),   # token-count accumulator
            ],
        ),
        compiler_params=pltpu.CompilerParams(
            dimension_semantics=("parallel", "arbitrary"),
        ),
    )(vector_sequence, mask3)

    layer_representations = combined[:, None, :]   # stack of num_layers=1 layers
    return {
        "combined_vector": combined,
        "layer_representations": layer_representations,
    }


def _ref_masked_mean(x, mask):
    xf = x.astype(jnp.float32)
    mf = mask.astype(jnp.float32)
    s = jnp.sum(xf * mf[:, :, None], axis=1)
    c = jnp.maximum(jnp.sum(mf, axis=1, keepdims=True), 1.0)
    return s / c


if __name__ == "__main__":
    key = jax.random.PRNGKey(0)
    k1, k2 = jax.random.split(key)

    # --- small f32 case (single grid step) -------------------------------
    B, T, D = 2, 8, 32
    x = jax.random.normal(k1, (B, T, D), dtype=jnp.float32)
    lengths = jnp.array([5, 8], dtype=jnp.int32)
    mask = (jnp.arange(T)[None, :] < lengths[:, None]).astype(jnp.float32)

    out = sequence_to_vector(x, mask, training=False)
    combined = jax.block_until_ready(out["combined_vector"])
    layers = jax.block_until_ready(out["layer_representations"])
    ref = _ref_masked_mean(x, mask)
    assert combined.shape == (B, D)
    assert layers.shape == (B, 1, D)
    assert jnp.allclose(combined, ref, atol=1e-5, rtol=1e-5)

    # --- bf16 case with multiple T tiles (exercises the accumulator path) --
    B2, T2, D2 = 8, 32, 128
    x2 = jax.random.normal(k2, (B2, T2, D2), dtype=jnp.float32).astype(jnp.bfloat16)
    lengths2 = jnp.arange(1, B2 + 1, dtype=jnp.int32) * 4
    mask2 = (jnp.arange(T2)[None, :] < lengths2[:, None]).astype(jnp.float32)

    out2 = sequence_to_vector(x2, mask2, training=False, t_tile=8)  # grid=(1, 4)
    combined2 = jax.block_until_ready(out2["combined_vector"])
    ref2 = _ref_masked_mean(x2, mask2)
    assert combined2.dtype == jnp.bfloat16
    assert jnp.allclose(combined2.astype(jnp.float32), ref2, atol=1e-2, rtol=1e-2)

    print("KERNEL_OK")
</pallas_src>

<mosaic_0001>
module attributes {stable_mosaic.version = 11 : i64} {
  func.func @_s2v_kernel(%arg0: i32, %arg1: i32, %arg2: memref<2x8x32xf32, #tpu.memory_space<vmem>>, %arg3: memref<2x8x1xf32, #tpu.memory_space<vmem>>, %arg4: memref<2x32xf32, #tpu.memory_space<vmem>>, %arg5: memref<2x32xf32, #tpu.memory_space<vmem>>, %arg6: memref<2x1xf32, #tpu.memory_space<vmem>>) attributes {dimension_semantics = [#tpu.dimension_semantics<parallel>, #tpu.dimension_semantics<arbitrary>], iteration_bounds = array<i64: 1, 1>, scalar_prefetch = 0 : i64, scratch_operands = 2 : i64, tpu.core_type = #tpu.core_type<tc>, window_params = [{transform_indices = @transform_0, window_bounds = array<i64: 2, 8, 32>}, {transform_indices = @transform_1, window_bounds = array<i64: 2, 8, 1>}, {transform_indices = @transform_2, window_bounds = array<i64: 2, 32>}]} {
    %c0_i32 = arith.constant 0 : i32
    %0 = arith.cmpi eq, %arg1, %c0_i32 : i32
    %1 = arith.extui %0 : i1 to i32
    %c0_i32_0 = arith.constant 0 : i32
    %2 = arith.cmpi ne, %1, %c0_i32_0 : i32
    scf.if %2 {
      %cst_17 = arith.constant 0.000000e+00 : f32
      %18 = vector.broadcast %cst_17 : f32 to vector<2x32xf32>
      %c0_18 = arith.constant 0 : index
      %c0_19 = arith.constant 0 : index
      %19 = vector.load %arg5[%c0_18, %c0_19] : memref<2x32xf32, #tpu.memory_space<vmem>>, vector<2x32xf32>
      tpu.vector_store %arg5[%c0_18, %c0_19], %18 {strides = array<i32>} : memref<2x32xf32, #tpu.memory_space<vmem>>, vector<2x32xf32>,
      %cst_20 = arith.constant 0.000000e+00 : f32
      %20 = vector.broadcast %cst_20 : f32 to vector<2x1xf32>
      %c0_21 = arith.constant 0 : index
      %c0_22 = arith.constant 0 : index
      %21 = vector.load %arg6[%c0_21, %c0_22] : memref<2x1xf32, #tpu.memory_space<vmem>>, vector<2x1xf32>
      tpu.vector_store %arg6[%c0_21, %c0_22], %20 {strides = array<i32>} : memref<2x1xf32, #tpu.memory_space<vmem>>, vector<2x1xf32>,
    } else {
    }
    %c0 = arith.constant 0 : index
    %c0_1 = arith.constant 0 : index
    %c0_2 = arith.constant 0 : index
    %3 = vector.load %arg2[%c0, %c0_1, %c0_2] : memref<2x8x32xf32, #tpu.memory_space<vmem>>, vector<2x8x32xf32>
    %c0_3 = arith.constant 0 : index
    %c0_4 = arith.constant 0 : index
    %c0_5 = arith.constant 0 : index
    %4 = vector.load %arg3[%c0_3, %c0_4, %c0_5] : memref<2x8x1xf32, #tpu.memory_space<vmem>>, vector<2x8x1xf32>
    %c0_6 = arith.constant 0 : index
    %c0_7 = arith.constant 0 : index
    %5 = vector.load %arg5[%c0_6, %c0_7] : memref<2x32xf32, #tpu.memory_space<vmem>>, vector<2x32xf32>
    %6 = vector.broadcast %4 : vector<2x8x1xf32> to vector<2x8x32xf32>
    %7 = arith.mulf %3, %6 : vector<2x8x32xf32>
    %cst = arith.constant dense<0.000000e+00> : vector<2x32xf32>
    %8 = vector.multi_reduction <add>, %7, %cst [1] : vector<2x8x32xf32> to vector<2x32xf32>
    %9 = arith.addf %5, %8 : vector<2x32xf32>
    %c0_8 = arith.constant 0 : index
    %c0_9 = arith.constant 0 : index
    %10 = vector.load %arg5[%c0_8, %c0_9] : memref<2x32xf32, #tpu.memory_space<vmem>>, vector<2x32xf32>
    tpu.vector_store %arg5[%c0_8, %c0_9], %9 {strides = array<i32>} : memref<2x32xf32, #tpu.memory_space<vmem>>, vector<2x32xf32>,
    %c0_10 = arith.constant 0 : index
    %c0_11 = arith.constant 0 : index
    %11 = vector.load %arg6[%c0_10, %c0_11] : memref<2x1xf32, #tpu.memory_space<vmem>>, vector<2x1xf32>
    %cst_12 = arith.constant dense<0.000000e+00> : vector<2x1xf32>
    %12 = vector.multi_reduction <add>, %4, %cst_12 [1] : vector<2x8x1xf32> to vector<2x1xf32>
    %13 = arith.addf %11, %12 : vector<2x1xf32>
    %c0_13 = arith.constant 0 : index
    %c0_14 = arith.constant 0 : index
    %14 = vector.load %arg6[%c0_13, %c0_14] : memref<2x1xf32, #tpu.memory_space<vmem>>, vector<2x1xf32>
    tpu.vector_store %arg6[%c0_13, %c0_14], %13 {strides = array<i32>} : memref<2x1xf32, #tpu.memory_space<vmem>>, vector<2x1xf32>,
    %c0_i32_15 = arith.constant 0 : i32
    %15 = arith.cmpi eq, %arg1, %c0_i32_15 : i32
    %16 = arith.extui %15 : i1 to i32
    %c0_i32_16 = arith.constant 0 : i32
    %17 = arith.cmpi ne, %16, %c0_i32_16 : i32
    scf.if %17 {
      %c0_17 = arith.constant 0 : index
      %c0_18 = arith.constant 0 : index
      %18 = vector.load %arg6[%c0_17, %c0_18] : memref<2x1xf32, #tpu.memory_space<vmem>>, vector<2x1xf32>
      %cst_19 = arith.constant 1.000000e+00 : f32
      %19 = vector.broadcast %cst_19 : f32 to vector<2x1xf32>
      %20 = arith.maximumf %18, %19 : vector<2x1xf32>
      %c0_20 = arith.constant 0 : index
      %c0_21 = arith.constant 0 : index
      %21 = vector.load %arg5[%c0_20, %c0_21] : memref<2x32xf32, #tpu.memory_space<vmem>>, vector<2x32xf32>
      %22 = vector.broadcast %20 : vector<2x1xf32> to vector<2x32xf32>
      %23 = arith.divf %21, %22 : vector<2x32xf32>
      %c0_22 = arith.constant 0 : index
      %c0_23 = arith.constant 0 : index
      %24 = vector.load %arg4[%c0_22, %c0_23] : memref<2x32xf32, #tpu.memory_space<vmem>>, vector<2x32xf32>
      tpu.vector_store %arg4[%c0_22, %c0_23], %23 {strides = array<i32>} : memref<2x32xf32, #tpu.memory_space<vmem>>, vector<2x32xf32>,
    } else {
    }
    return
  }
  func.func @transform_0(%arg0: i32, %arg1: i32) -> (i32, i32, i32) {
    %c0_i32 = arith.constant 0 : i32
    %c0_i32_0 = arith.constant 0 : i32
    return %arg0, %arg1, %c0_i32 : i32, i32, i32
  }
  func.func @transform_1(%arg0: i32, %arg1: i32) -> (i32, i32, i32) {
    %c0_i32 = arith.constant 0 : i32
    %c0_i32_0 = arith.constant 0 : i32
    return %arg0, %arg1, %c0_i32 : i32, i32, i32
  }
  func.func @transform_2(%arg0: i32, %arg1: i32) -> (i32, i32) {
    %c0_i32 = arith.constant 0 : i32
    %c0_i32_0 = arith.constant 0 : i32
    return %arg0, %c0_i32 : i32, i32
  }
}

</mosaic_0001>

<llo_original>
// kernel: tpu_custom_call.1
$region0: #{tpu_custom_call.1}
  #allocation0 [shape = 'u32[]', space=smem, size = 0x4, offset = 0x4, fixed_abs, tag = 'smem constant byte address 0x4 - core index']
  #allocation1 [shape = 'u32[144,128]{1,0:T(1,128)}', space=vmem, size = 0x12000, scoped, tag = 'internal scratch']
  #allocation2 [shape = 'f32[2,32]{1,0:T(2,128)}', space=vmem, size = 0x400, scoped, tag = 'scratch operand']
  #allocation3 [shape = 'f32[2,1]{1,0:T(2,128)}', space=vmem, size = 0x400, scoped, tag = 'scratch operand']
  %s0 = inlined_call_operand.vmem [shape: f32[2,8,32], index: 0, kind: input, shape index: {}]
  %s1 = inlined_call_operand.vmem [shape: f32[2,8,1], index: 1, kind: input, shape index: {}]
  %s2 = inlined_call_operand.hbm [shape: f32[2,32], index: 2, kind: output, shape index: {}]
  %s3 = sld [smem:[#allocation0]]
  $region26: #{tpu_custom_call.1} parent=0
    _
  %s5 = ssub.s32 1, %s3
  %s6 = scalar_select 0, %s5, %s3
  $region1: #{tpu_custom_call.1} parent=0
    #allocation4 [shape = 'u8[1024]{0}', space=vmem, size = 0x400, scoped, tag = 'output window, operand 0, single buffered']
    #allocation5 [shape = 's32[1]{0}', space=sflag, size = 0x4, scoped, tag = 'scoped memory for tpu_custom_call.1']
    %7 = vsyncpa [#allocation5], 0
    // Predicated region
    $region2: #{tpu_custom_call.1} parent=1 // pred_check
      _
    $region3: #{tpu_custom_call.1} parent=1 // pred_check_branch
      %9 = sbr.rel (0) target = $region5
    $region4: #{tpu_custom_call.1} parent=1 // pred_region
      _
    $region5: #{tpu_custom_call.1} parent=1 // pred_fallthru
      _
    // Predicated region
    $region6: #{tpu_custom_call.1} parent=1 // pred_check
      _
    $region7: #{tpu_custom_call.1} parent=1 // pred_check_branch
      %11 = sbr.rel (0) target = $region9
    $region8: #{tpu_custom_call.1} parent=1 // pred_region
      _
    $region9: #{tpu_custom_call.1} parent=1 // pred_fallthru
      _
    %p12 = scmp.eq.s32.totalorder 0, 0
    // Predicated region
    $region10: #{tpu_custom_call.1} parent=1 // pred_check
      %p13 = pneg %p12
    $region11: #{tpu_custom_call.1} parent=1 // pred_check_branch
      %15 = sbr.rel (%p13) target = $region13
    $region12: #{tpu_custom_call.1} parent=1 // pred_region
      %vm16 = vcmask 254976
      %17 = vst.msk [vmem:[#allocation2] sm:$0x3] %vm16, 0.0
      %vm18 = vcmask 1024
      %19 = vst.msk [vmem:[#allocation3] sm:$0x3] %vm18, 0.0
    $region13: #{tpu_custom_call.1} parent=1 // pred_fallthru
      _
    %v20 = vld [vmem:[%s0] sm:$0xff]
    %v21 = vld [vmem:[%s0 + $0x8] sm:$0xff]
    %v22 = vld [vmem:[%s1] sm:$0xff]
    %v23 = vld [vmem:[%s1 + $0x8] sm:$0xff]
    %v24 = vld [vmem:[#allocation2] sm:$0x3]
    %26 = vset.pattern.permute.xlu0 0
    %27 = vperm.xlu0 %26, %v22
    %v28 = vpop.permute.xlu0 %27
    %31 = vset.pattern.permute.xlu0 0
    %32 = vperm.xlu0 %31, %v23
    %v33 = vpop.permute.xlu0 %32
    %v35 = vmul.f32 %v20, %v28
    %v36 = vmul.f32 %v21, %v33
    %vm37 = vcmask 261120
    %v38 = vsel %vm37, %v35, 0.0
    %v39 = vrot.slane %v38, 4
    %v40 = vadd.f32 %v38, %v39
    %v41 = vrot.slane %v40, 2
    %v42 = vadd.f32 %v40, %v41
    %v43 = vrot.slane %v42, 1
    %v44 = vadd.f32 %v42, %v43
    %v45 = vsel %vm37, %v36, 0.0
    %v46 = vrot.slane %v45, 4
    %v47 = vadd.f32 %v45, %v46
    %v48 = vrot.slane %v47, 2
    %v49 = vadd.f32 %v47, %v48
    %v50 = vrot.slane %v49, 1
    %v51 = vadd.f32 %v49, %v50
    %vm54 = vcmask 1041409
    %v55 = vsel %vm54, %v51, %v44
    %v57 = vadd.f32 %v24, %v55
    %vm58 = vcmask 254976
    %59 = vst.msk [vmem:[#allocation2] sm:$0x3] %vm58, %v57
    %v60 = vld [vmem:[#allocation3] sm:$0x3]
    %vm61 = vcmask 7168
    %v62 = vsel %vm61, %v22, 0.0
    %v63 = vrot.slane %v62, 4
    %v64 = vadd.f32 %v62, %v63
    %v65 = vrot.slane %v64, 2
    %v66 = vadd.f32 %v64, %v65
    %v67 = vrot.slane %v66, 1
    %v68 = vadd.f32 %v66, %v67
    %v69 = vsel %vm61, %v23, 0.0
    %v70 = vrot.slane %v69, 4
    %v71 = vadd.f32 %v69, %v70
    %v72 = vrot.slane %v71, 2
    %v73 = vadd.f32 %v71, %v72
    %v74 = vrot.slane %v73, 1
    %v75 = vadd.f32 %v73, %v74
    %v78 = vsel %vm54, %v75, %v68
    %v80 = vadd.f32 %v60, %v78
    %vm81 = vcmask 1024
    %82 = vst.msk [vmem:[#allocation3] sm:$0x3] %vm81, %v80
    // Predicated region
    $region14: #{tpu_custom_call.1} parent=1 // pred_check
      %p83 = pneg %p12
    $region15: #{tpu_custom_call.1} parent=1 // pred_check_branch
      %85 = sbr.rel (%p83) target = $region17
    $region16: #{tpu_custom_call.1} parent=1 // pred_region
      %v86 = vld [vmem:[#allocation3] sm:$0x3]
      %v87 = vmax.f32 %v86, 1.0
      %v88 = vld [vmem:[#allocation2] sm:$0x3]
      %90 = vset.pattern.permute.xlu0 0
      %91 = vperm.xlu0 %90, %v87
      %v92 = vpop.permute.xlu0 %91
      %v94 = vrcp.pop %v92
      %v95 = vmul.f32 %v88, %v94
      %96 = vst.msk [vmem:[#allocation4] sm:$0x3] %vm58, %v95
    $region17: #{tpu_custom_call.1} parent=1 // pred_fallthru
      _
    // Predicated region
    $region18: #{tpu_custom_call.1} parent=1 // pred_check
      _
    $region19: #{tpu_custom_call.1} parent=1 // pred_check_branch
      %98 = sbr.rel (0) target = $region21
    $region20: #{tpu_custom_call.1} parent=1 // pred_region
      %s100 = ssub.s32 32, 32
      %101 = vsyncadd [#allocation5], %s100
      %s103 = sshll.u32 [#allocation4], 4
      %s104 = int_to_ptr.vmem [resolvable:$true] %s103
      %106 = dma.vmem_to_hbm [thread:$0]  %s104, 32, %s2, [#allocation5]
    $region21: #{tpu_custom_call.1} parent=1 // pred_fallthru
      _
    // Predicated region
    $region22: #{tpu_custom_call.1} parent=1 // pred_check
      _
    $region23: #{tpu_custom_call.1} parent=1 // pred_check_branch
      %108 = sbr.rel (0) target = $region25
    $region24: #{tpu_custom_call.1} parent=1 // pred_region
      %109 = dma.done [#allocation5], 32
    $region25: #{tpu_custom_call.1} parent=1 // pred_fallthru
      _
    %110 = vsyncpa [#allocation5], 1

</llo_original>
